<compile_context>
chip_gen: v6e
topology: v6e:2x2x1
jax: 0.10.0
libtpu: 0.0.40
codegen_flags: <defaults>
</compile_context>

<pallas_src>
import functools

import jax
import jax.numpy as jnp
from jax import lax
from jax.experimental import pallas as pl
from jax.experimental.pallas import tpu as pltpu


def _round_up(x, m):
    return (x + m - 1) // m * m


# ---------------------------------------------------------------------------
# Kernel 1: weight refinement (depthwise map conv + residual add)
# ---------------------------------------------------------------------------
def _refine_weight_kernel(w_ref, wpad_ref, mw_ref, o_ref, *, k, mk):
    # w_ref   : (k, k, bn)          original 2-D kernels (channels-last block)
    # wpad_ref: (k+2q, k+2q, bn)    zero-padded original kernels, q = mk // 2
    # mw_ref  : (mk, mk, bn)        per-2D-kernel map filters
    # o_ref   : (k, k, bn)          refined kernels
    acc = w_ref[...].astype(jnp.float32)                      # residual branch
    for di in range(mk):
        for dj in range(mk):
            tap = mw_ref[di:di + 1, dj:dj + 1, :].astype(jnp.float32)   # (1, 1, bn)
            acc = acc + wpad_ref[di:di + k, dj:dj + k, :].astype(jnp.float32) * tap
    o_ref[...] = acc.astype(o_ref.dtype)


def refine_weight(weight, convmap_weight, map_k):
    """refined = weight + depthwise_conv(weight, convmap_weight)  (groups == 1)."""
    out_c, in_cg, k, _ = weight.shape
    n2 = out_c * in_cg
    q = map_k // 2

    # Channels-last so the N2 axis sits on the lanes (lane-dense tiny kernel).
    w2d = jnp.transpose(weight.reshape(n2, k, k), (1, 2, 0))                 # (k, k, N2)
    mw = jnp.transpose(convmap_weight.reshape(n2, map_k, map_k), (1, 2, 0))  # (mk, mk, N2)

    # Grid over the N2 lane axis so large layers never exceed scoped VMEM.
    bn = min(8192, _round_up(n2, 128))
    n2p = _round_up(n2, bn)
    if n2p != n2:
        w2d = jnp.pad(w2d, ((0, 0), (0, 0), (0, n2p - n2)))
        mw = jnp.pad(mw, ((0, 0), (0, 0), (0, n2p - n2)))
    wpad = jnp.pad(w2d, ((q, q), (q, q), (0, 0)))                            # (k+2q, k+2q, N2p)

    refined = pl.pallas_call(
        functools.partial(_refine_weight_kernel, k=k, mk=map_k),
        out_shape=jax.ShapeDtypeStruct((k, k, n2p), weight.dtype),
        grid_spec=pltpu.PrefetchScalarGridSpec(
            num_scalar_prefetch=0,
            grid=(n2p // bn,),
            in_specs=[
                pl.BlockSpec((k, k, bn), lambda i: (0, 0, i)),
                pl.BlockSpec((k + 2 * q, k + 2 * q, bn), lambda i: (0, 0, i)),
                pl.BlockSpec((map_k, map_k, bn), lambda i: (0, 0, i)),
            ],
            out_specs=pl.BlockSpec((k, k, bn), lambda i: (0, 0, i))),
        compiler_params=pltpu.CompilerParams(dimension_semantics=("arbitrary",)),
    )(w2d, wpad, mw)

    refined = refined[:, :, :n2]
    return jnp.transpose(refined, (2, 0, 1)).reshape(out_c, in_cg, k, k)


# ---------------------------------------------------------------------------
# Kernel 2: conv2d (NHWC, row-band streamed, fused-M shift-and-matmul)
# ---------------------------------------------------------------------------
def _conv2d_kernel(x_hbm, w_ref, o_ref, xband, acc_ref, sem,
                   *, th, k, s, wcols, band, oc_blk):
    # x_hbm  : (N, Hp, Wp_pad, C)    padded image, left in HBM (pl.ANY)
    # w_ref  : (k, k, C, OCP)        refined kernels, OCP multiple of 128
    # o_ref  : (1, th, wcols, OCP)   output row tile (stride-s rows, stride-1 cols)
    # xband  : (2, band, Wp_pad, C)  double-buffered input row band (VMEM)
    # acc_ref: (th*wcols, OCP)       f32 accumulator (VMEM scratch)
    # sem    : (2,)                  DMA semaphores
    b = pl.program_id(0)
    r = pl.program_id(1)
    n_rt = pl.num_programs(1)
    slot = r % 2

    def start_fetch(row_tile, sl):
        pltpu.make_async_copy(
            x_hbm.at[b, pl.ds(row_tile * (th * s), band)],
            xband.at[sl], sem.at[sl]).start()

    # First row tile of each image: issue its own band fetch (one exposed DMA
    # per image); subsequent bands were prefetched by the previous step.
    @pl.when(r == 0)
    def _():
        start_fetch(r, slot)

    # Wait for the current band (only sem/shape matter for wait()).
    pltpu.make_async_copy(
        x_hbm.at[b, pl.ds(0, band)], xband.at[slot], sem.at[slot]).wait()

    # Prefetch the next band of the *same* image (row axis is "arbitrary", so
    # consecutive r run in order on one core; never chain across the batch axis
    # which is megacore-"parallel").
    @pl.when(r + 1 < n_rt)
    def _():
        start_fetch(r + 1, 1 - slot)

    m = th * wcols
    c = w_ref.shape[2]
    ocp = acc_ref.shape[1]
    for di in range(k):
        # Output row t uses input band row t*s + di (stride handled directly).
        rows = pl.ds(di, th) if s == 1 else pl.ds(di, th, stride=s)
        for dj in range(k):
            # Column shift dj folded into the input window -> product is
            # already output-shaped; no unaligned column slicing of results.
            xs = xband[slot, rows, pl.ds(dj, wcols), :]          # (th, wcols, C)
            xs2 = xs.reshape(m, c)                               # fused M = th*wcols
            for ob in range(ocp // oc_blk):
                osl = slice(ob * oc_blk, (ob + 1) * oc_blk)
                prod = jnp.dot(xs2, w_ref[di, dj, :, osl],
                               preferred_element_type=jnp.float32)   # (m, oc_blk)
                if di == 0 and dj == 0:
                    acc_ref[:, osl] = prod
                else:
                    acc_ref[:, osl] += prod
    o_ref[0] = acc_ref[...].reshape(th, wcols, ocp).astype(o_ref.dtype)


def conv2d_nchw(x, kernel, *, stride, padding, compute_dtype=jnp.bfloat16):
    """F.conv2d(x, kernel, stride, padding, dilation=1, groups=1, bias=None)."""
    n, c, h, w = x.shape
    out_c, ck, k, k2 = kernel.shape
    assert k == k2 and ck == c
    s, p = stride, padding

    ho = (h + 2 * p - k) // s + 1           # strided output rows (computed directly)
    wo = (w + 2 * p - k) // s + 1           # strided output cols (kept)
    wo1 = (w + 2 * p - k) + 1               # stride-1 output cols computed in-kernel
    assert ho >= 1 and wo1 >= 1

    cdt = jnp.dtype(compute_dtype) if compute_dtype is not None else jnp.dtype(x.dtype)
    out_dt = x.dtype

    wcols = _round_up(wo1, 8)               # sublane-aligned column tile
    wp_pad = wcols + k - 1                  # padded-input width the kernel sees
    ocp = _round_up(out_c, 128)             # lane-dense output channels
    oc_blk = 128

    # Pick the row-tile size (fused matmul M = th*wcols) under a VMEM budget.
    c_pad = _round_up(c, 128)
    cdt_size = cdt.itemsize
    out_size = jnp.dtype(out_dt).itemsize
    th = max(1, min(16, ho))
    while th > 1:
        band_est = (th - 1) * s + k
        vmem_est = (2 * band_est * wp_pad * c_pad * cdt_size   # x band x2
                    + th * wcols * ocp * 4                     # f32 accumulator
                    + 2 * th * wcols * ocp * out_size          # output x2
                    + 2 * k * k * c_pad * ocp * cdt_size)      # weights x2
        if vmem_est <= 24 * 1024 * 1024:
            break
        th = max(1, th // 2)

    n_rt = pl.cdiv(ho, th)
    ho_pad = n_rt * th
    band = (th - 1) * s + k
    hp_need = (ho_pad - 1) * s + k          # rows the last band may touch

    # TODO(synk): fold the spatial zero-pad into the band DMA (memset halos in
    # VMEM, DMA interior rows only) to avoid a full padded copy of x in HBM.
    x_nhwc = jnp.transpose(x, (0, 2, 3, 1)).astype(cdt)         # (N, H, W, C) bf16
    pad_b = max(0, hp_need - (h + p))
    pad_r = wp_pad - (w + p)
    x_pad = jnp.pad(x_nhwc, ((0, 0), (p, pad_b), (p, pad_r), (0, 0)))

    # (k, k, C, OCP) with zero-padded output channels (lane-dense matmul N).
    wt = jnp.transpose(kernel, (2, 3, 1, 0))
    wt = jnp.pad(wt, ((0, 0), (0, 0), (0, 0), (0, ocp - out_c))).astype(cdt)

    # TODO(synk): for very small C (< 128) fold W into the lanes / matmul K to
    # avoid 128-lane padding waste on the contraction dimension.
    flops = 2 * n * ho_pad * wcols * ocp * c * k * k
    bytes_accessed = (x_pad.size * x_pad.dtype.itemsize
                      + wt.size * wt.dtype.itemsize
                      + n * ho_pad * wcols * ocp * out_size)

    out = pl.pallas_call(
        functools.partial(_conv2d_kernel, th=th, k=k, s=s, wcols=wcols,
                          band=band, oc_blk=oc_blk),
        out_shape=jax.ShapeDtypeStruct((n, ho_pad, wcols, ocp), out_dt),
        grid_spec=pltpu.PrefetchScalarGridSpec(
            num_scalar_prefetch=0,
            grid=(n, n_rt),
            in_specs=[
                pl.BlockSpec(memory_space=pl.ANY),               # x stays in HBM
                pl.BlockSpec((k, k, c, ocp), lambda b, r: (0, 0, 0, 0)),
            ],
            out_specs=pl.BlockSpec((1, th, wcols, ocp), lambda b, r: (b, r, 0, 0)),
            scratch_shapes=[
                pltpu.VMEM((2, band, wp_pad, c), cdt),           # input band x2
                pltpu.VMEM((th * wcols, ocp), jnp.float32),      # accumulator
                pltpu.SemaphoreType.DMA((2,)),
            ]),
        compiler_params=pltpu.CompilerParams(
            # batch shards across TensorCores; row axis must stay sequential
            # (prefetch chaining + it would otherwise duplicate x DMA traffic).
            dimension_semantics=("parallel", "arbitrary")),
        cost_estimate=pl.CostEstimate(flops=flops, transcendentals=0,
                                      bytes_accessed=bytes_accessed),
    )(x_pad, wt)

    out = out[:, :ho, :, :out_c]
    if s > 1:
        out = out[:, :, :(wo - 1) * s + 1:s, :]                  # subsample columns
    else:
        out = out[:, :, :wo, :]
    return jnp.transpose(out, (0, 3, 1, 2))                      # NCHW


# ---------------------------------------------------------------------------
# Module wrapper
# ---------------------------------------------------------------------------
class RefConv:
    """JAX/Pallas equivalent of the PyTorch RefConv module (groups == 1)."""

    def __init__(self, in_channels, out_channels, kernel_size, stride,
                 padding=None, groups=1, map_k=3, compute_dtype=jnp.bfloat16):
        assert map_k <= kernel_size
        # TODO(synk): grouped RefConv (groups > 1) not implemented in the Pallas path.
        assert groups == 1, "Pallas RefConv currently supports groups == 1"
        self.in_channels = in_channels
        self.out_channels = out_channels
        self.kernel_size = kernel_size
        self.stride = stride
        self.groups = groups
        self.map_k = map_k
        self.padding = kernel_size // 2 if padding is None else padding
        self.num_2d_kernels = out_channels * in_channels // groups
        self.compute_dtype = compute_dtype     # bf16 MXU inputs, f32 accumulation
        self.weight = jnp.zeros(
            (out_channels, in_channels // groups, kernel_size, kernel_size),
            jnp.float32)
        self.convmap_weight = jnp.zeros(
            (self.num_2d_kernels, 1, map_k, map_k), jnp.float32)

    def __call__(self, x):
        refined = refine_weight(self.weight, self.convmap_weight, self.map_k)
        return conv2d_nchw(x, refined, stride=self.stride, padding=self.padding,
                           compute_dtype=self.compute_dtype)


# ---------------------------------------------------------------------------
# Plain-XLA references for the correctness checks
# ---------------------------------------------------------------------------
def _reference_refine(weight, convmap_weight, map_k):
    out_c, in_cg, k, _ = weight.shape
    n2 = out_c * in_cg
    mapped = lax.conv_general_dilated(
        weight.reshape(1, n2, k, k), convmap_weight,
        window_strides=(1, 1), padding=[(map_k // 2, map_k // 2)] * 2,
        dimension_numbers=("NCHW", "OIHW", "NCHW"),
        feature_group_count=n2, precision=lax.Precision.HIGHEST)
    return weight + mapped.reshape(weight.shape)


def _reference_conv(x, kernel, stride, padding):
    return lax.conv_general_dilated(
        x, kernel, window_strides=(stride, stride),
        padding=[(padding, padding)] * 2,
        dimension_numbers=("NCHW", "OIHW", "NCHW"),
        feature_group_count=1, precision=lax.Precision.HIGHEST)


if __name__ == "__main__":
    key = jax.random.PRNGKey(0)
    kx, kw, km = jax.random.split(key, 3)

    # Small shapes: batch=2, in_channels=4, out_channels=8, 16x16 spatial, 3x3 kernel.
    N, CIN, H, W = 2, 4, 16, 16
    COUT, KSIZE, STRIDE, MAP_K = 8, 3, 1, 3

    mod = RefConv(CIN, COUT, KSIZE, STRIDE, padding=None, groups=1, map_k=MAP_K)
    mod.weight = 0.1 * jax.random.normal(kw, mod.weight.shape, jnp.float32)
    mod.convmap_weight = 0.1 * jax.random.normal(km, mod.convmap_weight.shape,
                                                 jnp.float32)
    x = jax.random.normal(kx, (N, CIN, H, W), jnp.float32)

    out = jax.block_until_ready(mod(x))
    assert out.shape == (N, COUT, H, W)

    # 1) Weight-refinement kernel vs XLA depthwise conv (both f32).
    refined_pl = refine_weight(mod.weight, mod.convmap_weight, MAP_K)
    refined_ref = _reference_refine(mod.weight, mod.convmap_weight, MAP_K)
    err_w = float(jnp.max(jnp.abs(refined_pl - refined_ref)))
    assert err_w < 1e-5, f"refinement max abs error {err_w}"

    # 2) Conv kernel vs XLA conv with identical bf16-quantized inputs
    #    (f32 accumulation on both sides -> differences are accumulation order only).
    xq = x.astype(jnp.bfloat16).astype(jnp.float32)
    wq = refined_pl.astype(jnp.bfloat16).astype(jnp.float32)
    ref_bf16 = _reference_conv(xq, wq, STRIDE, mod.padding)
    err = float(jnp.max(jnp.abs(out - ref_bf16)))
    assert err < 2e-3, f"conv (bf16-matched) max abs error {err}"

    # 3) Loose sanity check against the pure-f32 PyTorch-equivalent reference.
    ref_f32 = _reference_conv(x, refined_ref, STRIDE, mod.padding)
    err32 = float(jnp.max(jnp.abs(out - ref_f32)))
    assert err32 < 5e-2, f"conv (f32 reference) max abs error {err32}"

    print("KERNEL_OK")
</pallas_src>

<mosaic_0001>
module attributes {stable_mosaic.version = 11 : i64} {
  func.func @_refine_weight_kernel(%arg0: i32, %arg1: memref<3x3x128xf32, #tpu.memory_space<vmem>>, %arg2: memref<5x5x128xf32, #tpu.memory_space<vmem>>, %arg3: memref<3x3x128xf32, #tpu.memory_space<vmem>>, %arg4: memref<3x3x128xf32, #tpu.memory_space<vmem>>) attributes {dimension_semantics = [#tpu.dimension_semantics<arbitrary>], iteration_bounds = array<i64: 1>, scalar_prefetch = 0 : i64, scratch_operands = 0 : i64, tpu.core_type = #tpu.core_type<tc>, window_params = [{transform_indices = @transform_0, window_bounds = array<i64: 3, 3, 128>}, {transform_indices = @transform_1, window_bounds = array<i64: 5, 5, 128>}, {transform_indices = @transform_2, window_bounds = array<i64: 3, 3, 128>}, {transform_indices = @transform_3, window_bounds = array<i64: 3, 3, 128>}]} {
    %c0 = arith.constant 0 : index
    %c0_0 = arith.constant 0 : index
    %c0_1 = arith.constant 0 : index
    %0 = vector.load %arg1[%c0, %c0_0, %c0_1] : memref<3x3x128xf32, #tpu.memory_space<vmem>>, vector<3x3x128xf32>
    %c0_2 = arith.constant 0 : index
    %c0_3 = arith.constant 0 : index
    %c0_4 = arith.constant 0 : index
    %1 = vector.load %arg3[%c0_2, %c0_3, %c0_4] : memref<3x3x128xf32, #tpu.memory_space<vmem>>, vector<1x1x128xf32>
    %c0_5 = arith.constant 0 : index
    %c0_6 = arith.constant 0 : index
    %c0_7 = arith.constant 0 : index
    %2 = vector.load %arg2[%c0_5, %c0_6, %c0_7] : memref<5x5x128xf32, #tpu.memory_space<vmem>>, vector<3x3x128xf32>
    %3 = vector.broadcast %1 : vector<1x1x128xf32> to vector<3x3x128xf32>
    %4 = arith.mulf %2, %3 : vector<3x3x128xf32>
    %5 = arith.addf %0, %4 : vector<3x3x128xf32>
    %c0_8 = arith.constant 0 : index
    %c1 = arith.constant 1 : index
    %c0_9 = arith.constant 0 : index
    %6 = vector.load %arg3[%c0_8, %c1, %c0_9] : memref<3x3x128xf32, #tpu.memory_space<vmem>>, vector<1x1x128xf32>
    %c0_10 = arith.constant 0 : index
    %c1_11 = arith.constant 1 : index
    %c0_12 = arith.constant 0 : index
    %7 = vector.load %arg2[%c0_10, %c1_11, %c0_12] : memref<5x5x128xf32, #tpu.memory_space<vmem>>, vector<3x3x128xf32>
    %8 = vector.broadcast %6 : vector<1x1x128xf32> to vector<3x3x128xf32>
    %9 = arith.mulf %7, %8 : vector<3x3x128xf32>
    %10 = arith.addf %5, %9 : vector<3x3x128xf32>
    %c0_13 = arith.constant 0 : index
    %c2 = arith.constant 2 : index
    %c0_14 = arith.constant 0 : index
    %11 = vector.load %arg3[%c0_13, %c2, %c0_14] : memref<3x3x128xf32, #tpu.memory_space<vmem>>, vector<1x1x128xf32>
    %c0_15 = arith.constant 0 : index
    %c2_16 = arith.constant 2 : index
    %c0_17 = arith.constant 0 : index
    %12 = vector.load %arg2[%c0_15, %c2_16, %c0_17] : memref<5x5x128xf32, #tpu.memory_space<vmem>>, vector<3x3x128xf32>
    %13 = vector.broadcast %11 : vector<1x1x128xf32> to vector<3x3x128xf32>
    %14 = arith.mulf %12, %13 : vector<3x3x128xf32>
    %15 = arith.addf %10, %14 : vector<3x3x128xf32>
    %c1_18 = arith.constant 1 : index
    %c0_19 = arith.constant 0 : index
    %c0_20 = arith.constant 0 : index
    %16 = vector.load %arg3[%c1_18, %c0_19, %c0_20] : memref<3x3x128xf32, #tpu.memory_space<vmem>>, vector<1x1x128xf32>
    %c1_21 = arith.constant 1 : index
    %c0_22 = arith.constant 0 : index
    %c0_23 = arith.constant 0 : index
    %17 = vector.load %arg2[%c1_21, %c0_22, %c0_23] : memref<5x5x128xf32, #tpu.memory_space<vmem>>, vector<3x3x128xf32>
    %18 = vector.broadcast %16 : vector<1x1x128xf32> to vector<3x3x128xf32>
    %19 = arith.mulf %17, %18 : vector<3x3x128xf32>
    %20 = arith.addf %15, %19 : vector<3x3x128xf32>
    %c1_24 = arith.constant 1 : index
    %c1_25 = arith.constant 1 : index
    %c0_26 = arith.constant 0 : index
    %21 = vector.load %arg3[%c1_24, %c1_25, %c0_26] : memref<3x3x128xf32, #tpu.memory_space<vmem>>, vector<1x1x128xf32>
    %c1_27 = arith.constant 1 : index
    %c1_28 = arith.constant 1 : index
    %c0_29 = arith.constant 0 : index
    %22 = vector.load %arg2[%c1_27, %c1_28, %c0_29] : memref<5x5x128xf32, #tpu.memory_space<vmem>>, vector<3x3x128xf32>
    %23 = vector.broadcast %21 : vector<1x1x128xf32> to vector<3x3x128xf32>
    %24 = arith.mulf %22, %23 : vector<3x3x128xf32>
    %25 = arith.addf %20, %24 : vector<3x3x128xf32>
    %c1_30 = arith.constant 1 : index
    %c2_31 = arith.constant 2 : index
    %c0_32 = arith.constant 0 : index
    %26 = vector.load %arg3[%c1_30, %c2_31, %c0_32] : memref<3x3x128xf32, #tpu.memory_space<vmem>>, vector<1x1x128xf32>
    %c1_33 = arith.constant 1 : index
    %c2_34 = arith.constant 2 : index
    %c0_35 = arith.constant 0 : index
    %27 = vector.load %arg2[%c1_33, %c2_34, %c0_35] : memref<5x5x128xf32, #tpu.memory_space<vmem>>, vector<3x3x128xf32>
    %28 = vector.broadcast %26 : vector<1x1x128xf32> to vector<3x3x128xf32>
    %29 = arith.mulf %27, %28 : vector<3x3x128xf32>
    %30 = arith.addf %25, %29 : vector<3x3x128xf32>
    %c2_36 = arith.constant 2 : index
    %c0_37 = arith.constant 0 : index
    %c0_38 = arith.constant 0 : index
    %31 = vector.load %arg3[%c2_36, %c0_37, %c0_38] : memref<3x3x128xf32, #tpu.memory_space<vmem>>, vector<1x1x128xf32>
    %c2_39 = arith.constant 2 : index
    %c0_40 = arith.constant 0 : index
    %c0_41 = arith.constant 0 : index
    %32 = vector.load %arg2[%c2_39, %c0_40, %c0_41] : memref<5x5x128xf32, #tpu.memory_space<vmem>>, vector<3x3x128xf32>
    %33 = vector.broadcast %31 : vector<1x1x128xf32> to vector<3x3x128xf32>
    %34 = arith.mulf %32, %33 : vector<3x3x128xf32>
    %35 = arith.addf %30, %34 : vector<3x3x128xf32>
    %c2_42 = arith.constant 2 : index
    %c1_43 = arith.constant 1 : index
    %c0_44 = arith.constant 0 : index
    %36 = vector.load %arg3[%c2_42, %c1_43, %c0_44] : memref<3x3x128xf32, #tpu.memory_space<vmem>>, vector<1x1x128xf32>
    %c2_45 = arith.constant 2 : index
    %c1_46 = arith.constant 1 : index
    %c0_47 = arith.constant 0 : index
    %37 = vector.load %arg2[%c2_45, %c1_46, %c0_47] : memref<5x5x128xf32, #tpu.memory_space<vmem>>, vector<3x3x128xf32>
    %38 = vector.broadcast %36 : vector<1x1x128xf32> to vector<3x3x128xf32>
    %39 = arith.mulf %37, %38 : vector<3x3x128xf32>
    %40 = arith.addf %35, %39 : vector<3x3x128xf32>
    %c2_48 = arith.constant 2 : index
    %c2_49 = arith.constant 2 : index
    %c0_50 = arith.constant 0 : index
    %41 = vector.load %arg3[%c2_48, %c2_49, %c0_50] : memref<3x3x128xf32, #tpu.memory_space<vmem>>, vector<1x1x128xf32>
    %c2_51 = arith.constant 2 : index
    %c2_52 = arith.constant 2 : index
    %c0_53 = arith.constant 0 : index
    %42 = vector.load %arg2[%c2_51, %c2_52, %c0_53] : memref<5x5x128xf32, #tpu.memory_space<vmem>>, vector<3x3x128xf32>
    %43 = vector.broadcast %41 : vector<1x1x128xf32> to vector<3x3x128xf32>
    %44 = arith.mulf %42, %43 : vector<3x3x128xf32>
    %45 = arith.addf %40, %44 : vector<3x3x128xf32>
    %c0_54 = arith.constant 0 : index
    %c0_55 = arith.constant 0 : index
    %c0_56 = arith.constant 0 : index
    %46 = vector.load %arg4[%c0_54, %c0_55, %c0_56] : memref<3x3x128xf32, #tpu.memory_space<vmem>>, vector<3x3x128xf32>
    tpu.vector_store %arg4[%c0_54, %c0_55, %c0_56], %45 {strides = array<i32>} : memref<3x3x128xf32, #tpu.memory_space<vmem>>, vector<3x3x128xf32>,
    return
  }
  func.func @transform_0(%arg0: i32) -> (i32, i32, i32) {
    %c0_i32 = arith.constant 0 : i32
    %c0_i32_0 = arith.constant 0 : i32
    %c0_i32_1 = arith.constant 0 : i32
    return %c0_i32, %c0_i32_0, %arg0 : i32, i32, i32
  }
  func.func @transform_1(%arg0: i32) -> (i32, i32, i32) {
    %c0_i32 = arith.constant 0 : i32
    %c0_i32_0 = arith.constant 0 : i32
    %c0_i32_1 = arith.constant 0 : i32
    return %c0_i32, %c0_i32_0, %arg0 : i32, i32, i32
  }
  func.func @transform_2(%arg0: i32) -> (i32, i32, i32) {
    %c0_i32 = arith.constant 0 : i32
    %c0_i32_0 = arith.constant 0 : i32
    %c0_i32_1 = arith.constant 0 : i32
    return %c0_i32, %c0_i32_0, %arg0 : i32, i32, i32
  }
  func.func @transform_3(%arg0: i32) -> (i32, i32, i32) {
    %c0_i32 = arith.constant 0 : i32
    %c0_i32_0 = arith.constant 0 : i32
    %c0_i32_1 = arith.constant 0 : i32
    return %c0_i32, %c0_i32_0, %arg0 : i32, i32, i32
  }
}

</mosaic_0001>

<llo_original>
// kernel: tpu_custom_call.1
$region0: #{tpu_custom_call.1}
  #allocation0 [shape = 'u32[]', space=smem, size = 0x4, offset = 0x4, fixed_abs, tag = 'smem constant byte address 0x4 - core index']
  #allocation1 [shape = 'u32[144,128]{1,0:T(1,128)}', space=vmem, size = 0x12000, scoped, tag = 'internal scratch']
  %s0 = inlined_call_operand.hbm [shape: f32[3,3,128], index: 0, kind: input, shape index: {}]
  %s1 = inlined_call_operand.hbm [shape: f32[5,5,128], index: 1, kind: input, shape index: {}]
  %s2 = inlined_call_operand.hbm [shape: f32[3,3,128], index: 2, kind: input, shape index: {}]
  %s3 = inlined_call_operand.hbm [shape: f32[3,3,128], index: 3, kind: output, shape index: {}]
  %s4 = sld [smem:[#allocation0]]
  $region34: #{tpu_custom_call.1} parent=0
    _
  %s6 = ssub.s32 1, %s4
  %s7 = scalar_select 0, %s6, %s4
  $region1: #{tpu_custom_call.1} parent=0
    #allocation2 [shape = 'u8[6144]{0}', space=vmem, size = 0x1800, scoped, tag = 'input window, operand 0, single buffered']
    #allocation3 [shape = 's32[1]{0}', space=sflag, size = 0x4, scoped, tag = 'scoped memory for tpu_custom_call.1']
    #allocation4 [shape = 's32[1]{0}', space=sflag, size = 0x4, scoped, tag = 'scoped memory for tpu_custom_call.1']
    #allocation5 [shape = 'u8[20480]{0}', space=vmem, size = 0x5000, scoped, tag = 'input window, operand 1, single buffered']
    #allocation6 [shape = 's32[1]{0}', space=sflag, size = 0x4, scoped, tag = 'scoped memory for tpu_custom_call.1']
    #allocation7 [shape = 'u8[6144]{0}', space=vmem, size = 0x1800, scoped, tag = 'input window, operand 2, single buffered']
    #allocation8 [shape = 'u8[6144]{0}', space=vmem, size = 0x1800, scoped, tag = 'output window, operand 0, single buffered']
    %8 = vsyncpa [#allocation3], 0
    %9 = vsyncpa [#allocation6], 0
    %10 = vsyncpa [#allocation4], 0
    // Predicated region
    $region2: #{tpu_custom_call.1} parent=1 // pred_check
      _
    $region3: #{tpu_custom_call.1} parent=1 // pred_check_branch
      %12 = sbr.rel (0) target = $region5
    $region4: #{tpu_custom_call.1} parent=1 // pred_region
      %s14 = ssub.s32 192, 192
      %15 = vsyncadd [#allocation3], %s14
      %s16 = sshll.u32 [#allocation2], 4
      %s17 = int_to_ptr.vmem [resolvable:$true] %s16
      %22 = dma.hbm_to_vmem [thread:$0]  %s0, 192, %s17, [#allocation3], 64, 64, 4
    $region5: #{tpu_custom_call.1} parent=1 // pred_fallthru
      _
    // Predicated region
    $region6: #{tpu_custom_call.1} parent=1 // pred_check
      _
    $region7: #{tpu_custom_call.1} parent=1 // pred_check_branch
      %24 = sbr.rel (0) target = $region9
    $region8: #{tpu_custom_call.1} parent=1 // pred_region
      %s26 = ssub.s32 640, 640
      %27 = vsyncadd [#allocation6], %s26
      %s28 = sshll.u32 [#allocation5], 4
      %s29 = int_to_ptr.vmem [resolvable:$true] %s28
      %34 = dma.hbm_to_vmem [thread:$0]  %s1, 640, %s29, [#allocation6], 128, 128, 8
    $region9: #{tpu_custom_call.1} parent=1 // pred_fallthru
      _
    // Predicated region
    $region10: #{tpu_custom_call.1} parent=1 // pred_check
      _
    $region11: #{tpu_custom_call.1} parent=1 // pred_check_branch
      %36 = sbr.rel (0) target = $region13
    $region12: #{tpu_custom_call.1} parent=1 // pred_region
      %s38 = ssub.s32 192, 192
      %39 = vsyncadd [#allocation6], %s38
      %s40 = sshll.u32 [#allocation7], 4
      %s41 = int_to_ptr.vmem [resolvable:$true] %s40
      %46 = dma.hbm_to_vmem [thread:$0]  %s2, 192, %s41, [#allocation6], 64, 64, 4
    $region13: #{tpu_custom_call.1} parent=1 // pred_fallthru
      _
    // Predicated region
    $region14: #{tpu_custom_call.1} parent=1 // pred_check
      _
    $region15: #{tpu_custom_call.1} parent=1 // pred_check_branch
      %48 = sbr.rel (0) target = $region17
    $region16: #{tpu_custom_call.1} parent=1 // pred_region
      %49 = dma.done [#allocation3], 192
    $region17: #{tpu_custom_call.1} parent=1 // pred_fallthru
      _
    // Predicated region
    $region18: #{tpu_custom_call.1} parent=1 // pred_check
      _
    $region19: #{tpu_custom_call.1} parent=1 // pred_check_branch
      %51 = sbr.rel (0) target = $region21
    $region20: #{tpu_custom_call.1} parent=1 // pred_region
      %52 = dma.done [#allocation6], 640
    $region21: #{tpu_custom_call.1} parent=1 // pred_fallthru
      _
    // Predicated region
    $region22: #{tpu_custom_call.1} parent=1 // pred_check
      _
    $region23: #{tpu_custom_call.1} parent=1 // pred_check_branch
      %54 = sbr.rel (0) target = $region25
    $region24: #{tpu_custom_call.1} parent=1 // pred_region
      %55 = dma.done [#allocation6], 192
    $region25: #{tpu_custom_call.1} parent=1 // pred_fallthru
      _
    %v56 = vld [vmem:[#allocation2] sm:$0x7]
    %v57 = vld [vmem:[#allocation2 + $0x4] sm:$0x7]
    %v58 = vld [vmem:[#allocation2 + $0x8] sm:$0x7]
    %v59 = vld [vmem:[#allocation7] sm:$0x1]
    %v60 = vld [vmem:[#allocation5] sm:$0x7]
    %v61 = vld [vmem:[#allocation5 + $0x8] sm:$0x7]
    %v62 = vld [vmem:[#allocation5 + $0x10] sm:$0x7]
    %v63 = vlaneseq
    %v64 = vshrl.u32 %v63, 7
    %v65 = vsub.s32 0, %v64
    %v66 = vrot.slane %v59, %v65
    %v67 = vmul.f32 %v60, %v66
    %v68 = vmul.f32 %v61, %v66
    %v69 = vmul.f32 %v62, %v66
    %v70 = vadd.f32 %v56, %v67
    %v71 = vadd.f32 %v57, %v68
    %v72 = vadd.f32 %v58, %v69
    %v73 = vld [vmem:[#allocation7 + $0x1] sm:$0x1]
    %v74 = vld [vmem:[#allocation5 + $0x1] sm:$0x7]
    %v75 = vld [vmem:[#allocation5 + $0x9] sm:$0x7]
    %v76 = vld [vmem:[#allocation5 + $0x11] sm:$0x7]
    %v77 = vlaneseq
    %v78 = vshrl.u32 %v77, 7
    %v79 = vsub.s32 0, %v78
    %v80 = vrot.slane %v73, %v79
    %v81 = vmul.f32 %v74, %v80
    %v82 = vmul.f32 %v75, %v80
    %v83 = vmul.f32 %v76, %v80
    %v84 = vadd.f32 %v70, %v81
    %v85 = vadd.f32 %v71, %v82
    %v86 = vadd.f32 %v72, %v83
    %v87 = vld [vmem:[#allocation7 + $0x2] sm:$0x1]
    %v88 = vld [vmem:[#allocation5 + $0x2] sm:$0x7]
    %v89 = vld [vmem:[#allocation5 + $0xa] sm:$0x7]
    %v90 = vld [vmem:[#allocation5 + $0x12] sm:$0x7]
    %v91 = vlaneseq
    %v92 = vshrl.u32 %v91, 7
    %v93 = vsub.s32 0, %v92
    %v94 = vrot.slane %v87, %v93
    %v95 = vmul.f32 %v88, %v94
    %v96 = vmul.f32 %v89, %v94
    %v97 = vmul.f32 %v90, %v94
    %v98 = vadd.f32 %v84, %v95
    %v99 = vadd.f32 %v85, %v96
    %v100 = vadd.f32 %v86, %v97
    %s101 = scalar_lea.vmem [#allocation7], 4
    %v102 = vld [vmem:[%s101] sm:$0x1]
    %s103 = scalar_lea.vmem [#allocation5], 8
    %v104 = vld [vmem:[%s103] sm:$0x7]
    %v105 = vld [vmem:[%s103 + $0x8] sm:$0x7]
    %v106 = vld [vmem:[%s103 + $0x10] sm:$0x7]
    %v107 = vlaneseq
    %v108 = vshrl.u32 %v107, 7
    %v109 = vsub.s32 0, %v108
    %v110 = vrot.slane %v102, %v109
    %v111 = vmul.f32 %v104, %v110
    %v112 = vmul.f32 %v105, %v110
    %v113 = vmul.f32 %v106, %v110
    %v114 = vadd.f32 %v98, %v111
    %v115 = vadd.f32 %v99, %v112
    %v116 = vadd.f32 %v100, %v113
    %v117 = vld [vmem:[%s101 + $0x1] sm:$0x1]
    %v118 = vld [vmem:[%s103 + $0x1] sm:$0x7]
    %v119 = vld [vmem:[%s103 + $0x9] sm:$0x7]
    %v120 = vld [vmem:[%s103 + $0x11] sm:$0x7]
    %v121 = vlaneseq
    %v122 = vshrl.u32 %v121, 7
    %v123 = vsub.s32 0, %v122
    %v124 = vrot.slane %v117, %v123
    %v125 = vmul.f32 %v118, %v124
    %v126 = vmul.f32 %v119, %v124
    %v127 = vmul.f32 %v120, %v124
    %v128 = vadd.f32 %v114, %v125
    %v129 = vadd.f32 %v115, %v126
    %v130 = vadd.f32 %v116, %v127
    %v131 = vld [vmem:[%s101 + $0x2] sm:$0x1]
    %v132 = vld [vmem:[%s103 + $0x2] sm:$0x7]
    %v133 = vld [vmem:[%s103 + $0xa] sm:$0x7]
    %v134 = vld [vmem:[%s103 + $0x12] sm:$0x7]
    %v135 = vlaneseq
    %v136 = vshrl.u32 %v135, 7
    %v137 = vsub.s32 0, %v136
    %v138 = vrot.slane %v131, %v137
    %v139 = vmul.f32 %v132, %v138
    %v140 = vmul.f32 %v133, %v138
    %v141 = vmul.f32 %v134, %v138
    %v142 = vadd.f32 %v128, %v139
    %v143 = vadd.f32 %v129, %v140
    %v144 = vadd.f32 %v130, %v141
    %s145 = scalar_lea.vmem [#allocation7], 8
    %v146 = vld [vmem:[%s145] sm:$0x1]
    %s147 = scalar_lea.vmem [#allocation5], 16
    %v148 = vld [vmem:[%s147] sm:$0x7]
    %v149 = vld [vmem:[%s147 + $0x8] sm:$0x7]
    %v150 = vld [vmem:[%s147 + $0x10] sm:$0x7]
    %v151 = vlaneseq
    %v152 = vshrl.u32 %v151, 7
    %v153 = vsub.s32 0, %v152
    %v154 = vrot.slane %v146, %v153
    %v155 = vmul.f32 %v148, %v154
    %v156 = vmul.f32 %v149, %v154
    %v157 = vmul.f32 %v150, %v154
    %v158 = vadd.f32 %v142, %v155
    %v159 = vadd.f32 %v143, %v156
    %v160 = vadd.f32 %v144, %v157
    %v161 = vld [vmem:[%s145 + $0x1] sm:$0x1]
    %v162 = vld [vmem:[%s147 + $0x1] sm:$0x7]
    %v163 = vld [vmem:[%s147 + $0x9] sm:$0x7]
    %v164 = vld [vmem:[%s147 + $0x11] sm:$0x7]
    %v165 = vlaneseq
    %v166 = vshrl.u32 %v165, 7
    %v167 = vsub.s32 0, %v166
    %v168 = vrot.slane %v161, %v167
    %v169 = vmul.f32 %v162, %v168
    %v170 = vmul.f32 %v163, %v168
    %v171 = vmul.f32 %v164, %v168
    %v172 = vadd.f32 %v158, %v169
    %v173 = vadd.f32 %v159, %v170
    %v174 = vadd.f32 %v160, %v171
    %v175 = vld [vmem:[%s145 + $0x2] sm:$0x1]
    %v176 = vld [vmem:[%s147 + $0x2] sm:$0x7]
    %v177 = vld [vmem:[%s147 + $0xa] sm:$0x7]
    %v178 = vld [vmem:[%s147 + $0x12] sm:$0x7]
    %v179 = vlaneseq
    %v180 = vshrl.u32 %v179, 7
    %v181 = vsub.s32 0, %v180
    %v182 = vrot.slane %v175, %v181
    %v183 = vmul.f32 %v176, %v182
    %v184 = vmul.f32 %v177, %v182
    %v185 = vmul.f32 %v178, %v182
    %v186 = vadd.f32 %v172, %v183
    %v187 = vadd.f32 %v173, %v184
    %v188 = vadd.f32 %v174, %v185
    %189 = vst [vmem:[#allocation8] sm:$0x7] %v186
    %190 = vst [vmem:[#allocation8 + $0x4] sm:$0x7] %v187
    %191 = vst [vmem:[#allocation8 + $0x8] sm:$0x7] %v188
    // Predicated region
    $region26: #{tpu_custom_call.1} parent=1 // pred_check
      _
    $region27: #{tpu_custom_call.1} parent=1 // pred_check_branch
      %193 = sbr.rel (0) target = $region29
    $region28: #{tpu_custom_call.1} parent=1 // pred_region
      %s195 = ssub.s32 192, 192
      %196 = vsyncadd [#allocation4], %s195
      %s197 = sshll.u32 [#allocation8], 4
      %s198 = int_to_ptr.vmem [resolvable:$true] %s197
      %203 = dma.vmem_to_hbm [thread:$0]  %s198, 192, %s3, [#allocation4], 64, 64, 4
    $region29: #{tpu_custom_call.1} parent=1 // pred_fallthru
      _
    // Predicated region
    $region30: #{tpu_custom_call.1} parent=1 // pred_check
      _
    $region31: #{tpu_custom_call.1} parent=1 // pred_check_branch
      %205 = sbr.rel (0) target = $region33
    $region32: #{tpu_custom_call.1} parent=1 // pred_region
      %206 = dma.done [#allocation4], 192
    $region33: #{tpu_custom_call.1} parent=1 // pred_fallthru
      _
    %207 = vsyncpa [#allocation3], 1
    %208 = vsyncpa [#allocation6], 1
    %209 = vsyncpa [#allocation4], 1

</llo_original>
